<compile_context>
chip_gen: v6e
topology: v6e:2x2x1
jax: 0.10.0
libtpu: 0.0.40
codegen_flags: <defaults>
</compile_context>

<pallas_src>
import jax
import jax.numpy as jnp
from jax.experimental import pallas as pl
from jax.experimental.pallas import tpu as pltpu

NUM_OPS = 5  # zero, identity, relu, sigmoid, relu(linear)


def mixed_op_fuse_kernel(w_ref, x_ref, wfc_ref, bfc_ref, o_ref):
    # Architecture weights live in SMEM -> cheap scalar reads.
    # op 0 (Zero) contributes w0 * 0 == 0: term dropped, no tile materialized.
    w_id = w_ref[1]    # op 1: Identity(all_x)
    w_relu = w_ref[2]  # op 2: ReLU(all_x)
    w_sig = w_ref[3]   # op 3: Sigmoid(all_x)
    w_fc = w_ref[4]    # op 4: ReLU(all_x @ Wfc + bfc)

    x = x_ref[...]

    acc = w_id * x
    acc = acc + w_relu * jnp.maximum(x, 0.0)
    acc = acc + w_sig * jax.nn.sigmoid(x)
    o_ref[...] = acc.astype(o_ref.dtype)

    # Gate the MXU branch on its architecture weight: near-one-hot /
    # discretized configs skip the matmul + relu entirely.
    @pl.when(w_fc != 0.0)
    def _():
        fc = jnp.dot(x, wfc_ref[...], preferred_element_type=jnp.float32)
        fc = jnp.maximum(fc + bfc_ref[...], 0.0)
        o_ref[...] = (o_ref[...] + w_fc * fc).astype(o_ref.dtype)


def mixed_op_fuse(all_x, weights, wfc, bfc, *, tb=128):
    B, D = all_x.shape
    tb = min(tb, B)
    grid = (pl.cdiv(B, tb),)
    return pl.pallas_call(
        mixed_op_fuse_kernel,
        out_shape=jax.ShapeDtypeStruct((B, D), jnp.float32),
        grid=grid,
        in_specs=[
            pl.BlockSpec(memory_space=pltpu.SMEM),        # architecture weights
            pl.BlockSpec((tb, D), lambda i: (i, 0)),      # all_x, tiled over batch
            pl.BlockSpec((D, D), lambda i: (0, 0)),       # FC weight (VMEM-resident)
            pl.BlockSpec((1, D), lambda i: (0, 0)),       # FC bias   (VMEM-resident)
        ],
        out_specs=pl.BlockSpec((tb, D), lambda i: (i, 0)),
        compiler_params=pltpu.CompilerParams(
            dimension_semantics=("parallel",),            # batch tiles are independent
            vmem_limit_bytes=64 * 1024 * 1024,            # fits v7x's 64 MiB VMEM
        ),
    )(weights, all_x, wfc, bfc)


def mixed_op_fuse_ref(all_x, weights, wfc, bfc):
    ops = [
        jnp.zeros_like(all_x),
        all_x,
        jnp.maximum(all_x, 0.0),
        jax.nn.sigmoid(all_x),
        jnp.maximum(all_x @ wfc + bfc, 0.0),
    ]
    return sum(w * o for w, o in zip(weights, ops))


if __name__ == "__main__":
    key = jax.random.PRNGKey(0)
    # Lane-dense layout: D is a multiple of 128; batch tiled in 128-row blocks.
    B, D = 256, 128

    kx, ka, kwf, kbf = jax.random.split(key, 4)
    all_x = jax.random.normal(kx, (B, D), dtype=jnp.float32)

    # architecture weights (softmaxed alphas, as DARTS does)
    alphas = jax.random.normal(ka, (NUM_OPS,), dtype=jnp.float32)
    weights = jax.nn.softmax(alphas)

    # deterministic "Linear(d_model, d_model)" parameters for the FC candidate op
    wfc = jax.random.normal(kwf, (D, D), dtype=jnp.float32) * (1.0 / jnp.sqrt(D))
    bfc = jax.random.normal(kbf, (1, D), dtype=jnp.float32) * 0.01

    out = mixed_op_fuse(all_x, weights, wfc, bfc, tb=128)
    out = jax.block_until_ready(out)

    ref = mixed_op_fuse_ref(all_x, weights, wfc, bfc)
    assert out.shape == (B, D)
    assert jnp.allclose(out, ref, atol=1e-4, rtol=1e-4), "mismatch vs reference"
    print("KERNEL_OK")
</pallas_src>

<mosaic_0001>
module attributes {stable_mosaic.version = 11 : i64} {
  func.func @mixed_op_fuse_kernel(%arg0: i32, %arg1: memref<5xf32, #tpu.memory_space<smem>>, %arg2: memref<128x128xf32, #tpu.memory_space<vmem>>, %arg3: memref<128x128xf32, #tpu.memory_space<vmem>>, %arg4: memref<1x128xf32, #tpu.memory_space<vmem>>, %arg5: memref<128x128xf32, #tpu.memory_space<vmem>>) attributes {dimension_semantics = [#tpu.dimension_semantics<parallel>], iteration_bounds = array<i64: 2>, scalar_prefetch = 0 : i64, scratch_operands = 0 : i64, tpu.core_type = #tpu.core_type<tc>, window_params = [{transform_indices = @transform_0, window_bounds = array<i64: 5>}, {transform_indices = @transform_1, window_bounds = array<i64: 128, 128>}, {pipeline_mode = #tpu.pipeline_mode<synchronous>, transform_indices = @transform_2, window_bounds = array<i64: 128, 128>}, {pipeline_mode = #tpu.pipeline_mode<synchronous>, transform_indices = @transform_3, window_bounds = array<i64: 1, 128>}, {transform_indices = @transform_4, window_bounds = array<i64: 128, 128>}]} {
    %c1 = arith.constant 1 : index
    %0 = memref.load %arg1[%c1] : memref<5xf32, #tpu.memory_space<smem>>
    %c2 = arith.constant 2 : index
    %1 = memref.load %arg1[%c2] : memref<5xf32, #tpu.memory_space<smem>>
    %c3 = arith.constant 3 : index
    %2 = memref.load %arg1[%c3] : memref<5xf32, #tpu.memory_space<smem>>
    %c4 = arith.constant 4 : index
    %3 = memref.load %arg1[%c4] : memref<5xf32, #tpu.memory_space<smem>>
    %c0 = arith.constant 0 : index
    %c0_0 = arith.constant 0 : index
    %4 = vector.load %arg2[%c0, %c0_0] : memref<128x128xf32, #tpu.memory_space<vmem>>, vector<128x128xf32>
    %5 = vector.broadcast %0 : f32 to vector<128x128xf32>
    %6 = arith.mulf %5, %4 : vector<128x128xf32>
    %cst = arith.constant 0.000000e+00 : f32
    %7 = vector.broadcast %cst : f32 to vector<128x128xf32>
    %8 = arith.maximumf %4, %7 : vector<128x128xf32>
    %9 = vector.broadcast %1 : f32 to vector<128x128xf32>
    %10 = arith.mulf %9, %8 : vector<128x128xf32>
    %11 = arith.addf %6, %10 : vector<128x128xf32>
    %12 = arith.negf %4 : vector<128x128xf32>
    %13 = math.exp %12 : vector<128x128xf32>
    %cst_1 = arith.constant 1.000000e+00 : f32
    %14 = vector.broadcast %cst_1 : f32 to vector<128x128xf32>
    %15 = arith.addf %14, %13 : vector<128x128xf32>
    %16 = arith.divf %14, %15 : vector<128x128xf32>
    %17 = vector.broadcast %2 : f32 to vector<128x128xf32>
    %18 = arith.mulf %17, %16 : vector<128x128xf32>
    %19 = arith.addf %11, %18 : vector<128x128xf32>
    %c0_2 = arith.constant 0 : index
    %c0_3 = arith.constant 0 : index
    %20 = vector.load %arg5[%c0_2, %c0_3] : memref<128x128xf32, #tpu.memory_space<vmem>>, vector<128x128xf32>
    tpu.vector_store %arg5[%c0_2, %c0_3], %19 {strides = array<i32>} : memref<128x128xf32, #tpu.memory_space<vmem>>, vector<128x128xf32>,
    %cst_4 = arith.constant 0.000000e+00 : f32
    %21 = arith.cmpf one, %3, %cst_4 : f32
    %22 = arith.extui %21 : i1 to i32
    %c0_i32 = arith.constant 0 : i32
    %23 = arith.cmpi ne, %22, %c0_i32 : i32
    scf.if %23 {
      %c0_5 = arith.constant 0 : index
      %c0_6 = arith.constant 0 : index
      %24 = vector.load %arg3[%c0_5, %c0_6] : memref<128x128xf32, #tpu.memory_space<vmem>>, vector<128x128xf32>
      %cst_7 = arith.constant dense<0.000000e+00> : vector<128x128xf32>
      %25 = tpu.matmul %4, %24, %cst_7 {dimension_numbers = #tpu.dot_dimension_numbers<[1], [0], [0], [1], [0, 0, 1, 1], [], []>} : vector<128x128xf32>, vector<128x128xf32>, vector<128x128xf32> -> vector<128x128xf32>
      %c0_8 = arith.constant 0 : index
      %c0_9 = arith.constant 0 : index
      %26 = vector.load %arg4[%c0_8, %c0_9] : memref<1x128xf32, #tpu.memory_space<vmem>>, vector<1x128xf32>
      %27 = vector.broadcast %26 : vector<1x128xf32> to vector<128x128xf32>
      %28 = arith.addf %25, %27 : vector<128x128xf32>
      %cst_10 = arith.constant 0.000000e+00 : f32
      %29 = vector.broadcast %cst_10 : f32 to vector<128x128xf32>
      %30 = arith.maximumf %28, %29 : vector<128x128xf32>
      %c0_11 = arith.constant 0 : index
      %c0_12 = arith.constant 0 : index
      %31 = vector.load %arg5[%c0_11, %c0_12] : memref<128x128xf32, #tpu.memory_space<vmem>>, vector<128x128xf32>
      %32 = vector.broadcast %3 : f32 to vector<128x128xf32>
      %33 = arith.mulf %32, %30 : vector<128x128xf32>
      %34 = arith.addf %31, %33 : vector<128x128xf32>
      %c0_13 = arith.constant 0 : index
      %c0_14 = arith.constant 0 : index
      %35 = vector.load %arg5[%c0_13, %c0_14] : memref<128x128xf32, #tpu.memory_space<vmem>>, vector<128x128xf32>
      tpu.vector_store %arg5[%c0_13, %c0_14], %34 {strides = array<i32>} : memref<128x128xf32, #tpu.memory_space<vmem>>, vector<128x128xf32>,
    } else {
    }
    return
  }
  func.func @transform_0(%arg0: i32) -> i32 {
    %c0_i32 = arith.constant 0 : i32
    %c0_i32_0 = arith.constant 0 : i32
    return %c0_i32 : i32
  }
  func.func @transform_1(%arg0: i32) -> (i32, i32) {
    %c0_i32 = arith.constant 0 : i32
    %c0_i32_0 = arith.constant 0 : i32
    return %arg0, %c0_i32 : i32, i32
  }
  func.func @transform_2(%arg0: i32) -> (i32, i32) {
    %c0_i32 = arith.constant 0 : i32
    %c0_i32_0 = arith.constant 0 : i32
    %c0_i32_1 = arith.constant 0 : i32
    return %c0_i32, %c0_i32_0 : i32, i32
  }
  func.func @transform_3(%arg0: i32) -> (i32, i32) {
    %c0_i32 = arith.constant 0 : i32
    %c0_i32_0 = arith.constant 0 : i32
    %c0_i32_1 = arith.constant 0 : i32
    return %c0_i32, %c0_i32_0 : i32, i32
  }
  func.func @transform_4(%arg0: i32) -> (i32, i32) {
    %c0_i32 = arith.constant 0 : i32
    %c0_i32_0 = arith.constant 0 : i32
    return %arg0, %c0_i32 : i32, i32
  }
}

</mosaic_0001>

<llo_original>
// kernel: tpu_custom_call.1
$region0: #{tpu_custom_call.1}
  #allocation0 [shape = 'u32[]', space=smem, size = 0x4, offset = 0x4, fixed_abs, tag = 'smem constant byte address 0x4 - core index']
  #allocation1 [shape = 'u32[144,128]{1,0:T(1,128)}', space=vmem, size = 0x12000, scoped, tag = 'internal scratch']
  %s0 = inlined_call_operand.hbm [shape: f32[5], index: 0, kind: input, shape index: {}]
  %s1 = inlined_call_operand.hbm [shape: f32[256,128], index: 1, kind: input, shape index: {}]
  %s2 = inlined_call_operand.hbm [shape: f32[128,128], index: 2, kind: input, shape index: {}]
  %s3 = inlined_call_operand.vmem [shape: f32[1,128], index: 3, kind: input, shape index: {}]
  %s4 = inlined_call_operand.hbm [shape: f32[256,128], index: 4, kind: output, shape index: {}]
  %s5 = sld [smem:[#allocation0]]
  $region65: #{tpu_custom_call.1} parent=0
    _
  %s7 = ssub.s32 1, %s5
  %s8 = scalar_select 0, %s7, %s5
  $region1: #{tpu_custom_call.1} parent=0
    #allocation2 [shape = 'u8[512]{0}', space=smem, size = 0x200, scoped, tag = 'input window, operand 0, single buffered']
    #allocation3 [shape = 's32[2]{0}', space=sflag, size = 0x8, scoped, tag = 'scoped memory for tpu_custom_call.1']
    #allocation4 [shape = 's32[2]{0}', space=sflag, size = 0x8, scoped, tag = 'scoped memory for tpu_custom_call.1']
    #allocation5 [shape = 's32[2]{0}', space=sflag, size = 0x8, scoped, tag = 'scoped memory for tpu_custom_call.1']
    #allocation6 [shape = 'u8[131072]{0}', space=vmem, size = 0x20000, scoped, tag = 'input window, operand 1']
    #allocation7 [shape = 'u8[65536]{0}', space=vmem, size = 0x10000, scoped, tag = 'input window, operand 2, single buffered']
    #allocation8 [shape = 's32[1]{0}', space=sflag, size = 0x4, scoped, tag = 'scoped memory for tpu_custom_call.1']
    #allocation9 [shape = 'u8[131072]{0}', space=vmem, size = 0x20000, scoped, tag = 'output window, operand 0']
    %9 = vsyncpa [#allocation5], 0
    %10 = vsyncpa [#allocation3], 0
    %s11 = scalar_lea.sflag [#allocation3], 1
    %12 = vsyncpa %s11, 0
    %13 = vsyncpa [#allocation8], 0
    %14 = vsyncpa [#allocation4], 0
    %s15 = scalar_lea.sflag [#allocation4], 1
    %16 = vsyncpa %s15, 0
    loop: start=0, step=1, limit=4
    $region2: #{tpu_custom_call.1} parent=1 // loop_pre_header
      _
    $region3: #{tpu_custom_call.1} parent=1 // loop_header
      %s18 = sphi 0, %s22
      %p19 = scmp.ge.s32.totalorder %s18, 4
      %s26 = sphi 0, %s26
      %s28 = sphi 0, %s26
      %s29 = sphi 0, %s28
      %s43 = sphi 0, %s29
      %s49 = sphi 0, %s51
      %s52 = sphi 0, %s49
      %s53 = sphi 0, %s52
      %s69 = sphi 0, %s53
      %s73 = sphi 0, %s73
      %s75 = sphi 0, %s73
      %s76 = sphi 0, %s75
      %s90 = sphi 0, %s76
      %s94 = sphi 0, %s94
      %s96 = sphi 0, %s94
      %s97 = sphi 0, %s96
      %s111 = sphi 0, %s97
      %s117 = sphi 0, %s119
      %s120 = sphi 0, %s117
      %s121 = sphi 0, %s120
      %s137 = sphi 0, %s121
    $region4: #{tpu_custom_call.1} parent=1 // loop_header_branch
      %21 = sbr.rel (%p19) target = $region8
    $region5: #{tpu_custom_call.1} parent=1 // loop_body
      %s23 = ssub.s32 %s18, 1
      %s24 = ssub.s32 %s18, 2
      %s25 = sadd.s32 %s18, 1
      %s27 = sadd.s32 %s26, 1
      %p30 = scmp.eq.s32.totalorder %s18, 1
      %p31 = scmp.ne.s32.totalorder %s26, %s28
      %p32 = scmp.eq.s32.totalorder %s18, 0
      %p33 = por %p31, %p32
      %p34 = scmp.ne.s32.totalorder %s26, %s28
      %p35 = scmp.eq.s32.totalorder %s23, 1
      %p36 = por %p34, %p35
      %p37 = scmp.ne.s32.totalorder %s28, %s29
      %p38 = scmp.eq.s32.totalorder %s23, 0
      %p39 = por %p37, %p38
      %p40 = scmp.ne.s32.totalorder %s28, %s29
      %p41 = scmp.eq.s32.totalorder %s24, 1
      %p42 = por %p40, %p41
      %p44 = scmp.ne.s32.totalorder %s29, %s43
      %p45 = scmp.eq.s32.totalorder %s24, 0
      %p46 = por %p44, %p45
      %s47 = ssub.s32 %s18, %s25
      %p48 = scmp.eq.s32.totalorder %s47, 0
      %s50 = sadd.s32 %s49, 1
      %s51 = scalar_select %p48, %s49, %s50
      %p54 = pneg %p48
      %p55 = scmp.eq.s32.totalorder %s18, 1
      %p56 = por %p54, %p55
      %p57 = scmp.ne.s32.totalorder %s49, %s52
      %p58 = scmp.eq.s32.totalorder %s18, 0
      %p59 = por %p57, %p58
      %p60 = scmp.ne.s32.totalorder %s49, %s52
      %p61 = scmp.eq.s32.totalorder %s23, 1
      %p62 = por %p60, %p61
      %p63 = scmp.ne.s32.totalorder %s52, %s53
      %p64 = scmp.eq.s32.totalorder %s23, 0
      %p65 = por %p63, %p64
      %p66 = scmp.ne.s32.totalorder %s52, %s53
      %p67 = scmp.eq.s32.totalorder %s24, 1
      %p68 = por %p66, %p67
      %p70 = scmp.ne.s32.totalorder %s53, %s69
      %p71 = scmp.eq.s32.totalorder %s24, 0
      %p72 = por %p70, %p71
      %s74 = sadd.s32 %s73, 1
      %p77 = scmp.eq.s32.totalorder %s18, 1
      %p78 = scmp.ne.s32.totalorder %s73, %s75
      %p79 = scmp.eq.s32.totalorder %s18, 0
      %p80 = por %p78, %p79
      %p81 = scmp.ne.s32.totalorder %s73, %s75
      %p82 = scmp.eq.s32.totalorder %s23, 1
      %p83 = por %p81, %p82
      %p84 = scmp.ne.s32.totalorder %s75, %s76
      %p85 = scmp.eq.s32.totalorder %s23, 0
      %p86 = por %p84, %p85
      %p87 = scmp.ne.s32.totalorder %s75, %s76
      %p88 = scmp.eq.s32.totalorder %s24, 1
      %p89 = por %p87, %p88
      %p91 = scmp.ne.s32.totalorder %s76, %s90
      %p92 = scmp.eq.s32.totalorder %s24, 0
      %p93 = por %p91, %p92
      %s95 = sadd.s32 %s94, 1
      %p98 = scmp.eq.s32.totalorder %s18, 1
      %p99 = scmp.ne.s32.totalorder %s94, %s96
      %p100 = scmp.eq.s32.totalorder %s18, 0
      %p101 = por %p99, %p100
      %p102 = scmp.ne.s32.totalorder %s94, %s96
      %p103 = scmp.eq.s32.totalorder %s23, 1
      %p104 = por %p102, %p103
      %p105 = scmp.ne.s32.totalorder %s96, %s97
      %p106 = scmp.eq.s32.totalorder %s23, 0
      %p107 = por %p105, %p106
      %p108 = scmp.ne.s32.totalorder %s96, %s97
      %p109 = scmp.eq.s32.totalorder %s24, 1
      %p110 = por %p108, %p109
      %p112 = scmp.ne.s32.totalorder %s97, %s111
      %p113 = scmp.eq.s32.totalorder %s24, 0
      %p114 = por %p112, %p113
      %s115 = ssub.s32 %s18, %s25
      %p116 = scmp.eq.s32.totalorder %s115, 0
      %s118 = sadd.s32 %s117, 1
      %s119 = scalar_select %p116, %s117, %s118
      %p122 = pneg %p116
      %p123 = scmp.eq.s32.totalorder %s18, 1
      %p124 = por %p122, %p123
      %p125 = scmp.ne.s32.totalorder %s117, %s120
      %p126 = scmp.eq.s32.totalorder %s18, 0
      %p127 = por %p125, %p126
      %p128 = scmp.ne.s32.totalorder %s117, %s120
      %p129 = scmp.eq.s32.totalorder %s23, 1
      %p130 = por %p128, %p129
      %p131 = scmp.ne.s32.totalorder %s120, %s121
      %p132 = scmp.eq.s32.totalorder %s23, 0
      %p133 = por %p131, %p132
      %p134 = scmp.ne.s32.totalorder %s120, %s121
      %p135 = scmp.eq.s32.totalorder %s24, 1
      %p136 = por %p134, %p135
      %p138 = scmp.ne.s32.totalorder %s121, %s137
      %p139 = scmp.eq.s32.totalorder %s24, 0
      %p140 = por %p138, %p139
      %p141 = scmp.le.s32.totalorder 1, %s18
      %p142 = scmp.lt.s32.totalorder %s18, 3
      %p143 = pnand %p141, %p142
      %p144 = pneg %p143
      // Predicated region
      $region9: #{tpu_custom_call.1} parent=5 // pred_check
        _
      $region10: #{tpu_custom_call.1} parent=5 // pred_check_branch
        %146 = sbr.rel (%p143) target = $region12
      $region11: #{tpu_custom_call.1} parent=5 // pred_region
        %s147 = ssub.s32 %s18, 1
        // Predicated region
        $region13: #{tpu_custom_call.1} parent=11 // pred_check
          %p148 = pneg %p39
        $region14: #{tpu_custom_call.1} parent=11 // pred_check_branch
          %150 = sbr.rel (%p148) target = $region16
        $region15: #{tpu_custom_call.1} parent=11 // pred_region
          %s152 = ssub.s32 16, 16
          %153 = vsyncadd [#allocation5], %s152
          %156 = dma.hbm_to_smem %s0, 16, [#allocation2], [#allocation5]
        $region16: #{tpu_custom_call.1} parent=11 // pred_fallthru
          _
        // Predicated region
        $region17: #{tpu_custom_call.1} parent=11 // pred_check
          %p157 = pneg %p86
        $region18: #{tpu_custom_call.1} parent=11 // pred_check_branch
          %159 = sbr.rel (%p157) target = $region20
        $region19: #{tpu_custom_call.1} parent=11 // pred_region
          %s161 = ssub.s32 2048, 2048
          %162 = vsyncadd [#allocation8], %s161
          %s163 = sshll.u32 [#allocation7], 4
          %s164 = int_to_ptr.vmem [resolvable:$true] %s163
          %169 = dma.hbm_to_vmem [thread:$0]  %s2, 2048, %s164, [#allocation8], 128, 128, 8
        $region20: #{tpu_custom_call.1} parent=11 // pred_fallthru
          _
        // Predicated region
        $region21: #{tpu_custom_call.1} parent=11 // pred_check
          %p170 = pneg %p107
        $region22: #{tpu_custom_call.1} parent=11 // pred_check_branch
          %172 = sbr.rel (%p170) target = $region24
        $region23: #{tpu_custom_call.1} parent=11 // pred_region
          _
        $region24: #{tpu_custom_call.1} parent=11 // pred_fallthru
          _
      $region12: #{tpu_custom_call.1} parent=5 // pred_fallthru
        _
      %p173 = scmp.lt.s32.totalorder %s18, 2
      // Predicated region
      $region25: #{tpu_custom_call.1} parent=5 // pred_check
        %p174 = pneg %p173
      $region26: #{tpu_custom_call.1} parent=5 // pred_check_branch
        %176 = sbr.rel (%p174) target = $region28
      $region27: #{tpu_custom_call.1} parent=5 // pred_region
        // Predicated region
        $region29: #{tpu_custom_call.1} parent=27 // pred_check
          %p177 = pneg %p59
        $region30: #{tpu_custom_call.1} parent=27 // pred_check_branch
          %179 = sbr.rel (%p177) target = $region32
        $region31: #{tpu_custom_call.1} parent=27 // pred_region
          %s180 = sand.u32 %s49, 1
          %s181 = scalar_lea.sflag [#allocation3], %s180
          %s182 = sand.u32 %s49, 1
          %s183 = smul.addr %s182, 128
          %s184 = scalar_lea.vmem [#allocation6], %s183
          %s185 = smul.u32 16, %s18
          %s187 = ssub.s32 2048, 2048
          %188 = vsyncadd %s181, %s187
          %s189 = smul.addr %s185, 128
          %s190 = scalar_lea.hbm %s1, %s189
          %s191 = sshll.u32 %s184, 4
          %s192 = int_to_ptr.vmem [resolvable:$true] %s191
          %197 = dma.hbm_to_vmem [thread:$0]  %s190, 2048, %s192, %s181, 128, 128, 8
        $region32: #{tpu_custom_call.1} parent=27 // pred_fallthru
          _
      $region28: #{tpu_custom_call.1} parent=5 // pred_fallthru
        _
      %p198 = scmp.le.s32.totalorder 1, %s18
      %p199 = scmp.lt.s32.totalorder %s18, 3
      %p200 = pnand %p198, %p199
      %p201 = pneg %p200
      // Predicated region
      $region33: #{tpu_custom_call.1} parent=5 // pred_check
        _
      $region34: #{tpu_custom_call.1} parent=5 // pred_check_branch
        %203 = sbr.rel (%p200) target = $region36
      $region35: #{tpu_custom_call.1} parent=5 // pred_region
        %s204 = ssub.s32 %s18, 1
        // Predicated region
        $region37: #{tpu_custom_call.1} parent=35 // pred_check
          %p205 = pneg %p39
        $region38: #{tpu_custom_call.1} parent=35 // pred_check_branch
          %207 = sbr.rel (%p205) target = $region40
        $region39: #{tpu_custom_call.1} parent=35 // pred_region
          %208 = dma.done [#allocation5], 16
        $region40: #{tpu_custom_call.1} parent=35 // pred_fallthru
          _
        %s209 = sand.u32 %s52, 1
        %s210 = scalar_lea.sflag [#allocation3], %s209
        %s211 = sand.u32 %s52, 1
        %s212 = smul.addr %s211, 128
        %s213 = scalar_lea.vmem [#allocation6], %s212
        // Predicated region
        $region41: #{tpu_custom_call.1} parent=35 // pred_check
          %p214 = pneg %p65
        $region42: #{tpu_custom_call.1} parent=35 // pred_check_branch
          %216 = sbr.rel (%p214) target = $region44
        $region43: #{tpu_custom_call.1} parent=35 // pred_region
          %217 = dma.done %s210, 2048
        $region44: #{tpu_custom_call.1} parent=35 // pred_fallthru
          _
        // Predicated region
        $region45: #{tpu_custom_call.1} parent=35 // pred_check
          %p218 = pneg %p86
        $region46: #{tpu_custom_call.1} parent=35 // pred_check_branch
          %220 = sbr.rel (%p218) target = $region48
        $region47: #{tpu_custom_call.1} parent=35 // pred_region
          %221 = dma.done [#allocation8], 2048
        $region48: #{tpu_custom_call.1} parent=35 // pred_fallthru
          _
        %222 = sfence
        %p223 = pneg %p39
        %p224 = pneg %p36
        %s225 = sand.u32 %s52, 1
        %s226 = scalar_lea.sflag [#allocation3], %s225
        %s227 = sand.u32 %s52, 1
        %s228 = smul.addr %s227, 128
        %s229 = scalar_lea.vmem [#allocation6], %s228
        %p230 = pneg %p65
        %p231 = pneg %p62
        %p232 = pneg %p86
        %p233 = pneg %p83
        %p234 = pneg %p107
        %p235 = pneg %p104
        %p236 = pneg %p133
        %p237 = pneg %p130
        %s238 = sand.u32 %s120, 1
        %s239 = scalar_lea.sflag [#allocation4], %s238
        %s240 = sand.u32 %s120, 1
        %s241 = smul.addr %s240, 128
        %s242 = scalar_lea.vmem [#allocation9], %s241
        %s243 = smul.u32 16, %s23
        %s244 = smul.u32 16, %s23
        %s245 = sld [smem:[#allocation2 + $0x1]]
        %s246 = sld [smem:[#allocation2 + $0x2]]
        %s247 = sld [smem:[#allocation2 + $0x3]]
        %s248 = sld [smem:[#allocation2 + $0x4]]
        %v249 = vld [vmem:[%s213] sm:$0xff]
        %v250 = vld [vmem:[%s213 + $0x8] sm:$0xff]
        %v251 = vld [vmem:[%s213 + $0x10] sm:$0xff]
        %v252 = vld [vmem:[%s213 + $0x18] sm:$0xff]
        %v253 = vld [vmem:[%s213 + $0x20] sm:$0xff]
        %v254 = vld [vmem:[%s213 + $0x28] sm:$0xff]
        %v255 = vld [vmem:[%s213 + $0x30] sm:$0xff]
        %v256 = vld [vmem:[%s213 + $0x38] sm:$0xff]
        %v257 = vld [vmem:[%s213 + $0x40] sm:$0xff]
        %v258 = vld [vmem:[%s213 + $0x48] sm:$0xff]
        %v259 = vld [vmem:[%s213 + $0x50] sm:$0xff]
        %v260 = vld [vmem:[%s213 + $0x58] sm:$0xff]
        %v261 = vld [vmem:[%s213 + $0x60] sm:$0xff]
        %v262 = vld [vmem:[%s213 + $0x68] sm:$0xff]
        %v263 = vld [vmem:[%s213 + $0x70] sm:$0xff]
        %v264 = vld [vmem:[%s213 + $0x78] sm:$0xff]
        %v265 = vstv %s245
        %v266 = vmul.f32 %v265, %v249
        %v267 = vmul.f32 %v265, %v250
        %v268 = vmul.f32 %v265, %v251
        %v269 = vmul.f32 %v265, %v252
        %v270 = vmul.f32 %v265, %v253
        %v271 = vmul.f32 %v265, %v254
        %v272 = vmul.f32 %v265, %v255
        %v273 = vmul.f32 %v265, %v256
        %v274 = vmul.f32 %v265, %v257
        %v275 = vmul.f32 %v265, %v258
        %v276 = vmul.f32 %v265, %v259
        %v277 = vmul.f32 %v265, %v260
        %v278 = vmul.f32 %v265, %v261
        %v279 = vmul.f32 %v265, %v262
        %v280 = vmul.f32 %v265, %v263
        %v281 = vmul.f32 %v265, %v264
        %v282 = vmax.f32 %v249, 0.0
        %v283 = vmax.f32 %v250, 0.0
        %v284 = vmax.f32 %v251, 0.0
        %v285 = vmax.f32 %v252, 0.0
        %v286 = vmax.f32 %v253, 0.0
        %v287 = vmax.f32 %v254, 0.0
        %v288 = vmax.f32 %v255, 0.0
        %v289 = vmax.f32 %v256, 0.0
        %v290 = vmax.f32 %v257, 0.0
        %v291 = vmax.f32 %v258, 0.0
        %v292 = vmax.f32 %v259, 0.0
        %v293 = vmax.f32 %v260, 0.0
        %v294 = vmax.f32 %v261, 0.0
        %v295 = vmax.f32 %v262, 0.0
        %v296 = vmax.f32 %v263, 0.0
        %v297 = vmax.f32 %v264, 0.0
        %v298 = vstv %s246
        %v299 = vmul.f32 %v298, %v282
        %v300 = vmul.f32 %v298, %v283
        %v301 = vmul.f32 %v298, %v284
        %v302 = vmul.f32 %v298, %v285
        %v303 = vmul.f32 %v298, %v286
        %v304 = vmul.f32 %v298, %v287
        %v305 = vmul.f32 %v298, %v288
        %v306 = vmul.f32 %v298, %v289
        %v307 = vmul.f32 %v298, %v290
        %v308 = vmul.f32 %v298, %v291
        %v309 = vmul.f32 %v298, %v292
        %v310 = vmul.f32 %v298, %v293
        %v311 = vmul.f32 %v298, %v294
        %v312 = vmul.f32 %v298, %v295
        %v313 = vmul.f32 %v298, %v296
        %v314 = vmul.f32 %v298, %v297
        %v315 = vadd.f32 %v266, %v299
        %v316 = vadd.f32 %v267, %v300
        %v317 = vadd.f32 %v268, %v301
        %v318 = vadd.f32 %v269, %v302
        %v319 = vadd.f32 %v270, %v303
        %v320 = vadd.f32 %v271, %v304
        %v321 = vadd.f32 %v272, %v305
        %v322 = vadd.f32 %v273, %v306
        %v323 = vadd.f32 %v274, %v307
        %v324 = vadd.f32 %v275, %v308
        %v325 = vadd.f32 %v276, %v309
        %v326 = vadd.f32 %v277, %v310
        %v327 = vadd.f32 %v278, %v311
        %v328 = vadd.f32 %v279, %v312
        %v329 = vadd.f32 %v280, %v313
        %v330 = vadd.f32 %v281, %v314
        %v331 = vxor.u32 %v249, 2147483648
        %v332 = vxor.u32 %v250, 2147483648
        %v333 = vxor.u32 %v251, 2147483648
        %v334 = vxor.u32 %v252, 2147483648
        %v335 = vxor.u32 %v253, 2147483648
        %v336 = vxor.u32 %v254, 2147483648
        %v337 = vxor.u32 %v255, 2147483648
        %v338 = vxor.u32 %v256, 2147483648
        %v339 = vxor.u32 %v257, 2147483648
        %v340 = vxor.u32 %v258, 2147483648
        %v341 = vxor.u32 %v259, 2147483648
        %v342 = vxor.u32 %v260, 2147483648
        %v343 = vxor.u32 %v261, 2147483648
        %v344 = vxor.u32 %v262, 2147483648
        %v345 = vxor.u32 %v263, 2147483648
        %v346 = vxor.u32 %v264, 2147483648
        %v347 = vmul.f32 %v331, 1.442695
        %v348 = vpow.pop %v347
        %v349 = vmul.f32 %v332, 1.442695
        %v350 = vpow.pop %v349
        %v351 = vmul.f32 %v333, 1.442695
        %v352 = vpow.pop %v351
        %v353 = vmul.f32 %v334, 1.442695
        %v354 = vpow.pop %v353
        %v355 = vmul.f32 %v335, 1.442695
        %v356 = vpow.pop %v355
        %v357 = vmul.f32 %v336, 1.442695
        %v358 = vpow.pop %v357
        %v359 = vmul.f32 %v337, 1.442695
        %v360 = vpow.pop %v359
        %v361 = vmul.f32 %v338, 1.442695
        %v362 = vpow.pop %v361
        %v363 = vmul.f32 %v339, 1.442695
        %v364 = vpow.pop %v363
        %v365 = vmul.f32 %v340, 1.442695
        %v366 = vpow.pop %v365
        %v367 = vmul.f32 %v341, 1.442695
        %v368 = vpow.pop %v367
        %v369 = vmul.f32 %v342, 1.442695
        %v370 = vpow.pop %v369
        %v371 = vmul.f32 %v343, 1.442695
        %v372 = vpow.pop %v371
        %v373 = vmul.f32 %v344, 1.442695
        %v374 = vpow.pop %v373
        %v375 = vmul.f32 %v345, 1.442695
        %v376 = vpow.pop %v375
        %v377 = vmul.f32 %v346, 1.442695
        %v378 = vpow.pop %v377
        %v379 = vadd.f32 %v348, 1.0
        %v380 = vadd.f32 %v350, 1.0
        %v381 = vadd.f32 %v352, 1.0
        %v382 = vadd.f32 %v354, 1.0
        %v383 = vadd.f32 %v356, 1.0
        %v384 = vadd.f32 %v358, 1.0
        %v385 = vadd.f32 %v360, 1.0
        %v386 = vadd.f32 %v362, 1.0
        %v387 = vadd.f32 %v364, 1.0
        %v388 = vadd.f32 %v366, 1.0
        %v389 = vadd.f32 %v368, 1.0
        %v390 = vadd.f32 %v370, 1.0
        %v391 = vadd.f32 %v372, 1.0
        %v392 = vadd.f32 %v374, 1.0
        %v393 = vadd.f32 %v376, 1.0
        %v394 = vadd.f32 %v378, 1.0
        %v395 = vrcp.pop %v379
        %v396 = vmul.f32 1.0, %v395
        %v397 = vrcp.pop %v380
        %v398 = vmul.f32 1.0, %v397
        %v399 = vrcp.pop %v381
        %v400 = vmul.f32 1.0, %v399
        %v401 = vrcp.pop %v382
        %v402 = vmul.f32 1.0, %v401
        %v403 = vrcp.pop %v383
        %v404 = vmul.f32 1.0, %v403
        %v405 = vrcp.pop %v384
        %v406 = vmul.f32 1.0, %v405
        %v407 = vrcp.pop %v385
        %v408 = vmul.f32 1.0, %v407
        %v409 = vrcp.pop %v386
        %v410 = vmul.f32 1.0, %v409
        %v411 = vrcp.pop %v387
        %v412 = vmul.f32 1.0, %v411
        %v413 = vrcp.pop %v388
        %v414 = vmul.f32 1.0, %v413
        %v415 = vrcp.pop %v389
        %v416 = vmul.f32 1.0, %v415
        %v417 = vrcp.pop %v390
        %v418 = vmul.f32 1.0, %v417
        %v419 = vrcp.pop %v391
        %v420 = vmul.f32 1.0, %v419
        %v421 = vrcp.pop %v392
        %v422 = vmul.f32 1.0, %v421
        %v423 = vrcp.pop %v393
        %v424 = vmul.f32 1.0, %v423
        %v425 = vrcp.pop %v394
        %v426 = vmul.f32 1.0, %v425
        %v427 = vstv %s247
        %v428 = vmul.f32 %v427, %v396
        %v429 = vmul.f32 %v427, %v398
        %v430 = vmul.f32 %v427, %v400
        %v431 = vmul.f32 %v427, %v402
        %v432 = vmul.f32 %v427, %v404
        %v433 = vmul.f32 %v427, %v406
        %v434 = vmul.f32 %v427, %v408
        %v435 = vmul.f32 %v427, %v410
        %v436 = vmul.f32 %v427, %v412
        %v437 = vmul.f32 %v427, %v414
        %v438 = vmul.f32 %v427, %v416
        %v439 = vmul.f32 %v427, %v418
        %v440 = vmul.f32 %v427, %v420
        %v441 = vmul.f32 %v427, %v422
        %v442 = vmul.f32 %v427, %v424
        %v443 = vmul.f32 %v427, %v426
        %v444 = vadd.f32 %v315, %v428
        %v445 = vadd.f32 %v316, %v429
        %v446 = vadd.f32 %v317, %v430
        %v447 = vadd.f32 %v318, %v431
        %v448 = vadd.f32 %v319, %v432
        %v449 = vadd.f32 %v320, %v433
        %v450 = vadd.f32 %v321, %v434
        %v451 = vadd.f32 %v322, %v435
        %v452 = vadd.f32 %v323, %v436
        %v453 = vadd.f32 %v324, %v437
        %v454 = vadd.f32 %v325, %v438
        %v455 = vadd.f32 %v326, %v439
        %v456 = vadd.f32 %v327, %v440
        %v457 = vadd.f32 %v328, %v441
        %v458 = vadd.f32 %v329, %v442
        %v459 = vadd.f32 %v330, %v443
        %460 = vst [vmem:[%s242] sm:$0xff] %v444
        %461 = vst [vmem:[%s242 + $0x8] sm:$0xff] %v445
        %462 = vst [vmem:[%s242 + $0x10] sm:$0xff] %v446
        %463 = vst [vmem:[%s242 + $0x18] sm:$0xff] %v447
        %464 = vst [vmem:[%s242 + $0x20] sm:$0xff] %v448
        %465 = vst [vmem:[%s242 + $0x28] sm:$0xff] %v449
        %466 = vst [vmem:[%s242 + $0x30] sm:$0xff] %v450
        %467 = vst [vmem:[%s242 + $0x38] sm:$0xff] %v451
        %468 = vst [vmem:[%s242 + $0x40] sm:$0xff] %v452
        %469 = vst [vmem:[%s242 + $0x48] sm:$0xff] %v453
        %470 = vst [vmem:[%s242 + $0x50] sm:$0xff] %v454
        %471 = vst [vmem:[%s242 + $0x58] sm:$0xff] %v455
        %472 = vst [vmem:[%s242 + $0x60] sm:$0xff] %v456
        %473 = vst [vmem:[%s242 + $0x68] sm:$0xff] %v457
        %474 = vst [vmem:[%s242 + $0x70] sm:$0xff] %v458
        %475 = vst [vmem:[%s242 + $0x78] sm:$0xff] %v459
        %p476 = scmp.ne.f32.partialorder %s248, 0.0
        // Predicated region
        $region49: #{tpu_custom_call.1} parent=35 // pred_check
          %p477 = pneg %p476
        $region50: #{tpu_custom_call.1} parent=35 // pred_check_branch
          %479 = sbr.rel (%p477) target = $region52
        $region51: #{tpu_custom_call.1} parent=35 // pred_region
          %v480 = vld [vmem:[#allocation7] sm:$0xff]
          %v481 = vld [vmem:[#allocation7 + $0x8] sm:$0xff]
          %v482 = vld [vmem:[#allocation7 + $0x10] sm:$0xff]
          %v483 = vld [vmem:[#allocation7 + $0x18] sm:$0xff]
          %v484 = vld [vmem:[#allocation7 + $0x20] sm:$0xff]
          %v485 = vld [vmem:[#allocation7 + $0x28] sm:$0xff]
          %v486 = vld [vmem:[#allocation7 + $0x30] sm:$0xff]
          %v487 = vld [vmem:[#allocation7 + $0x38] sm:$0xff]
          %v488 = vld [vmem:[#allocation7 + $0x40] sm:$0xff]
          %v489 = vld [vmem:[#allocation7 + $0x48] sm:$0xff]
          %v490 = vld [vmem:[#allocation7 + $0x50] sm:$0xff]
          %v491 = vld [vmem:[#allocation7 + $0x58] sm:$0xff]
          %v492 = vld [vmem:[#allocation7 + $0x60] sm:$0xff]
          %v493 = vld [vmem:[#allocation7 + $0x68] sm:$0xff]
          %v494 = vld [vmem:[#allocation7 + $0x70] sm:$0xff]
          %v495 = vld [vmem:[#allocation7 + $0x78] sm:$0xff]
          %v496 = vld [vmem:[%s3] sm:$0x1]
          %v498 = vlaneseq
          %v499 = vshrl.u32 %v498, 7
          %v500 = vsub.s32 0, %v499
          %v501 = vrot.slane %v496, %v500
          %503 = vmatprep.subr.mxu0 0.0
          %504 = vmatpush1.msra.mxu0 %v495
          %505 = vmatprep.subr.mxu0 0.0
          %506 = vmatpush1.msra.mxu0 %v494
          %507 = vmatprep.subr.mxu0 0.0
          %508 = vmatpush1.msra.mxu0 %v493
          %509 = vmatprep.subr.mxu0 0.0
          %510 = vmatpush1.msra.mxu0 %v492
          %511 = vmatprep.subr.mxu0 0.0
          %512 = vmatpush1.msra.mxu0 %v491
          %513 = vmatprep.subr.mxu0 0.0
          %514 = vmatpush1.msra.mxu0 %v490
          %515 = vmatprep.subr.mxu0 0.0
          %516 = vmatpush1.msra.mxu0 %v489
          %517 = vmatprep.subr.mxu0 0.0
          %518 = vmatpush1.msra.mxu0 %v488
          %519 = vmatprep.subr.mxu0 0.0
          %520 = vmatpush1.msra.mxu0 %v487
          %521 = vmatprep.subr.mxu0 0.0
          %522 = vmatpush1.msra.mxu0 %v486
          %523 = vmatprep.subr.mxu0 0.0
          %524 = vmatpush1.msra.mxu0 %v485
          %525 = vmatprep.subr.mxu0 0.0
          %526 = vmatpush1.msra.mxu0 %v484
          %527 = vmatprep.subr.mxu0 0.0
          %528 = vmatpush1.msra.mxu0 %v483
          %529 = vmatprep.subr.mxu0 0.0
          %530 = vmatpush1.msra.mxu0 %v482
          %531 = vmatprep.subr.mxu0 0.0
          %532 = vmatpush1.msra.mxu0 %v481
          %533 = vmatprep.subr.mxu0 0.0
          %534 = vmatpush1.msra.mxu0 %v480
          %535 = vmatprep.subr.mxu0 0.0
          %536 = vmatpush2.msra.mxu0 0.0
          %537 = vmatprep.subr.mxu0 0.0
          %538 = vmatpush2.msra.mxu0 0.0
          %539 = vmatprep.subr.mxu0 0.0
          %540 = vmatpush2.msra.mxu0 0.0
          %541 = vmatprep.subr.mxu0 0.0
          %542 = vmatpush2.msra.mxu0 0.0
          %543 = vmatprep.subr.mxu0 0.0
          %544 = vmatpush2.msra.mxu0 0.0
          %545 = vmatprep.subr.mxu0 0.0
          %546 = vmatpush2.msra.mxu0 0.0
          %547 = vmatprep.subr.mxu0 0.0
          %548 = vmatpush2.msra.mxu0 0.0
          %549 = vmatprep.subr.mxu0 0.0
          %550 = vmatpush2.msra.mxu0 0.0
          %551 = vmatprep.subr.mxu0 0.0
          %552 = vmatpush2.msra.mxu0 0.0
          %553 = vmatprep.subr.mxu0 0.0
          %554 = vmatpush2.msra.mxu0 0.0
          %555 = vmatprep.subr.mxu0 0.0
          %556 = vmatpush2.msra.mxu0 0.0
          %557 = vmatprep.subr.mxu0 0.0
          %558 = vmatpush2.msra.mxu0 0.0
          %559 = vmatprep.subr.mxu0 0.0
          %560 = vmatpush2.msra.mxu0 0.0
          %561 = vmatprep.subr.mxu0 0.0
          %562 = vmatpush2.msra.mxu0 0.0
          %563 = vmatprep.subr.mxu0 0.0
          %564 = vmatpush2.msra.mxu0 0.0
          %565 = vmatprep.subr.mxu0 0.0
          %566 = vmatpush2.msra.mxu0 0.0
          %567 = vmatprep.mubr.f32.mxu0 0.0
          %568 = vmatmul.mubr.f32.gmra.mxu0 %v249
          %v569 = vpop.f32.mrf.mxu0
          %v570 = vadd.f32 %v501, %v569
          %v571 = vpop.f32.mrf.mxu0
          %572 = vmatprep.mubr.f32.mxu0 0.0
          %573 = vmatmul.mubr.f32.gmra.mxu0 %v250
          %v574 = vpop.f32.mrf.mxu0
          %v575 = vadd.f32 %v501, %v574
          %v576 = vpop.f32.mrf.mxu0
          %577 = vmatprep.mubr.f32.mxu0 0.0
          %578 = vmatmul.mubr.f32.gmra.mxu0 %v251
          %v579 = vpop.f32.mrf.mxu0
          %v580 = vadd.f32 %v501, %v579
          %v581 = vpop.f32.mrf.mxu0
          %582 = vmatprep.mubr.f32.mxu0 0.0
          %583 = vmatmul.mubr.f32.gmra.mxu0 %v252
          %v584 = vpop.f32.mrf.mxu0
          %v585 = vadd.f32 %v501, %v584
          %v586 = vpop.f32.mrf.mxu0
          %587 = vmatprep.mubr.f32.mxu0 0.0
          %588 = vmatmul.mubr.f32.gmra.mxu0 %v253
          %v589 = vpop.f32.mrf.mxu0
          %v590 = vadd.f32 %v501, %v589
          %v591 = vpop.f32.mrf.mxu0
          %592 = vmatprep.mubr.f32.mxu0 0.0
          %593 = vmatmul.mubr.f32.gmra.mxu0 %v254
          %v594 = vpop.f32.mrf.mxu0
          %v595 = vadd.f32 %v501, %v594
          %v596 = vpop.f32.mrf.mxu0
          %597 = vmatprep.mubr.f32.mxu0 0.0
          %598 = vmatmul.mubr.f32.gmra.mxu0 %v255
          %v599 = vpop.f32.mrf.mxu0
          %v600 = vadd.f32 %v501, %v599
          %v601 = vpop.f32.mrf.mxu0
          %602 = vmatprep.mubr.f32.mxu0 0.0
          %603 = vmatmul.mubr.f32.gmra.mxu0 %v256
          %v604 = vpop.f32.mrf.mxu0
          %v605 = vadd.f32 %v501, %v604
          %v606 = vpop.f32.mrf.mxu0
          %607 = vmatprep.mubr.f32.mxu0 0.0
          %608 = vmatmul.mubr.f32.gmra.mxu0 %v257
          %v609 = vpop.f32.mrf.mxu0
          %v610 = vadd.f32 %v501, %v609
          %v611 = vpop.f32.mrf.mxu0
          %612 = vmatprep.mubr.f32.mxu0 0.0
          %613 = vmatmul.mubr.f32.gmra.mxu0 %v258
          %v614 = vpop.f32.mrf.mxu0
          %v615 = vadd.f32 %v501, %v614
          %v616 = vpop.f32.mrf.mxu0
          %617 = vmatprep.mubr.f32.mxu0 0.0
          %618 = vmatmul.mubr.f32.gmra.mxu0 %v259
          %v619 = vpop.f32.mrf.mxu0
          %v620 = vadd.f32 %v501, %v619
          %v621 = vpop.f32.mrf.mxu0
          %622 = vmatprep.mubr.f32.mxu0 0.0
          %623 = vmatmul.mubr.f32.gmra.mxu0 %v260
          %v624 = vpop.f32.mrf.mxu0
          %v625 = vadd.f32 %v501, %v624
          %v626 = vpop.f32.mrf.mxu0
          %627 = vmatprep.mubr.f32.mxu0 0.0
          %628 = vmatmul.mubr.f32.gmra.mxu0 %v261
          %v629 = vpop.f32.mrf.mxu0
          %v630 = vadd.f32 %v501, %v629
          %v631 = vpop.f32.mrf.mxu0
          %632 = vmatprep.mubr.f32.mxu0 0.0
          %633 = vmatmul.mubr.f32.gmra.mxu0 %v262
          %v634 = vpop.f32.mrf.mxu0
          %v635 = vadd.f32 %v501, %v634
          %v636 = vpop.f32.mrf.mxu0
          %637 = vmatprep.mubr.f32.mxu0 0.0
          %638 = vmatmul.mubr.f32.gmra.mxu0 %v263
          %v639 = vpop.f32.mrf.mxu0
          %v640 = vadd.f32 %v501, %v639
          %v641 = vpop.f32.mrf.mxu0
          %642 = vmatprep.mubr.f32.mxu0 0.0
          %643 = vmatmul.mubr.f32.gmra.mxu0 %v264
          %v644 = vpop.f32.mrf.mxu0
          %v645 = vadd.f32 %v501, %v644
          %v646 = vpop.f32.mrf.mxu0
          %647 = vdwg.mxu0
          %v648 = vmax.f32 %v570, 0.0
          %v649 = vmax.f32 %v575, 0.0
          %v650 = vmax.f32 %v580, 0.0
          %v651 = vmax.f32 %v585, 0.0
          %v652 = vmax.f32 %v590, 0.0
          %v653 = vmax.f32 %v595, 0.0
          %v654 = vmax.f32 %v600, 0.0
          %v655 = vmax.f32 %v605, 0.0
          %v656 = vmax.f32 %v610, 0.0
          %v657 = vmax.f32 %v615, 0.0
          %v658 = vmax.f32 %v620, 0.0
          %v659 = vmax.f32 %v625, 0.0
          %v660 = vmax.f32 %v630, 0.0
          %v661 = vmax.f32 %v635, 0.0
          %v662 = vmax.f32 %v640, 0.0
          %v663 = vmax.f32 %v645, 0.0
          %v664 = vld [vmem:[%s242] sm:$0xff]
          %v665 = vld [vmem:[%s242 + $0x8] sm:$0xff]
          %v666 = vld [vmem:[%s242 + $0x10] sm:$0xff]
          %v667 = vld [vmem:[%s242 + $0x18] sm:$0xff]
          %v668 = vld [vmem:[%s242 + $0x20] sm:$0xff]
          %v669 = vld [vmem:[%s242 + $0x28] sm:$0xff]
          %v670 = vld [vmem:[%s242 + $0x30] sm:$0xff]
          %v671 = vld [vmem:[%s242 + $0x38] sm:$0xff]
          %v672 = vld [vmem:[%s242 + $0x40] sm:$0xff]
          %v673 = vld [vmem:[%s242 + $0x48] sm:$0xff]
          %v674 = vld [vmem:[%s242 + $0x50] sm:$0xff]
          %v675 = vld [vmem:[%s242 + $0x58] sm:$0xff]
          %v676 = vld [vmem:[%s242 + $0x60] sm:$0xff]
          %v677 = vld [vmem:[%s242 + $0x68] sm:$0xff]
          %v678 = vld [vmem:[%s242 + $0x70] sm:$0xff]
          %v679 = vld [vmem:[%s242 + $0x78] sm:$0xff]
          %v680 = vstv %s248
          %v681 = vmul.f32 %v680, %v648
          %v682 = vmul.f32 %v680, %v649
          %v683 = vmul.f32 %v680, %v650
          %v684 = vmul.f32 %v680, %v651
          %v685 = vmul.f32 %v680, %v652
          %v686 = vmul.f32 %v680, %v653
          %v687 = vmul.f32 %v680, %v654
          %v688 = vmul.f32 %v680, %v655
          %v689 = vmul.f32 %v680, %v656
          %v690 = vmul.f32 %v680, %v657
          %v691 = vmul.f32 %v680, %v658
          %v692 = vmul.f32 %v680, %v659
          %v693 = vmul.f32 %v680, %v660
          %v694 = vmul.f32 %v680, %v661
          %v695 = vmul.f32 %v680, %v662
          %v696 = vmul.f32 %v680, %v663
          %v697 = vadd.f32 %v664, %v681
          %v698 = vadd.f32 %v665, %v682
          %v699 = vadd.f32 %v666, %v683
          %v700 = vadd.f32 %v667, %v684
          %v701 = vadd.f32 %v668, %v685
          %v702 = vadd.f32 %v669, %v686
          %v703 = vadd.f32 %v670, %v687
          %v704 = vadd.f32 %v671, %v688
          %v705 = vadd.f32 %v672, %v689
          %v706 = vadd.f32 %v673, %v690
          %v707 = vadd.f32 %v674, %v691
          %v708 = vadd.f32 %v675, %v692
          %v709 = vadd.f32 %v676, %v693
          %v710 = vadd.f32 %v677, %v694
          %v711 = vadd.f32 %v678, %v695
          %v712 = vadd.f32 %v679, %v696
          %713 = vst [vmem:[%s242] sm:$0xff] %v697
          %714 = vst [vmem:[%s242 + $0x8] sm:$0xff] %v698
          %715 = vst [vmem:[%s242 + $0x10] sm:$0xff] %v699
          %716 = vst [vmem:[%s242 + $0x18] sm:$0xff] %v700
          %717 = vst [vmem:[%s242 + $0x20] sm:$0xff] %v701
          %718 = vst [vmem:[%s242 + $0x28] sm:$0xff] %v702
          %719 = vst [vmem:[%s242 + $0x30] sm:$0xff] %v703
          %720 = vst [vmem:[%s242 + $0x38] sm:$0xff] %v704
          %721 = vst [vmem:[%s242 + $0x40] sm:$0xff] %v705
          %722 = vst [vmem:[%s242 + $0x48] sm:$0xff] %v706
          %723 = vst [vmem:[%s242 + $0x50] sm:$0xff] %v707
          %724 = vst [vmem:[%s242 + $0x58] sm:$0xff] %v708
          %725 = vst [vmem:[%s242 + $0x60] sm:$0xff] %v709
          %726 = vst [vmem:[%s242 + $0x68] sm:$0xff] %v710
          %727 = vst [vmem:[%s242 + $0x70] sm:$0xff] %v711
          %728 = vst [vmem:[%s242 + $0x78] sm:$0xff] %v712
        $region52: #{tpu_custom_call.1} parent=35 // pred_fallthru
          _
        %s729 = sand.u32 %s120, 1
        %s730 = scalar_lea.sflag [#allocation4], %s729
        %s731 = sand.u32 %s120, 1
        %s732 = smul.addr %s731, 128
        %s733 = scalar_lea.vmem [#allocation9], %s732
        // Predicated region
        $region53: #{tpu_custom_call.1} parent=35 // pred_check
          %p734 = pneg %p130
        $region54: #{tpu_custom_call.1} parent=35 // pred_check_branch
          %736 = sbr.rel (%p734) target = $region56
        $region55: #{tpu_custom_call.1} parent=35 // pred_region
          %s737 = smul.u32 16, %s23
          %s739 = ssub.s32 2048, 2048
          %740 = vsyncadd %s730, %s739
          %s741 = smul.addr %s737, 128
          %s742 = scalar_lea.hbm %s4, %s741
          %s743 = sshll.u32 %s733, 4
          %s744 = int_to_ptr.vmem [resolvable:$true] %s743
          %749 = dma.vmem_to_hbm [thread:$0]  %s744, 2048, %s742, %s730, 128, 128, 8
        $region56: #{tpu_custom_call.1} parent=35 // pred_fallthru
          _
      $region36: #{tpu_custom_call.1} parent=5 // pred_fallthru
        _
      %p750 = scmp.le.s32.totalorder 2, %s18
      // Predicated region
      $region57: #{tpu_custom_call.1} parent=5 // pred_check
        %p751 = pneg %p750
      $region58: #{tpu_custom_call.1} parent=5 // pred_check_branch
        %753 = sbr.rel (%p751) target = $region60
      $region59: #{tpu_custom_call.1} parent=5 // pred_region
        %s754 = ssub.s32 %s18, 2
        // Predicated region
        $region61: #{tpu_custom_call.1} parent=59 // pred_check
          %p755 = pneg %p136
        $region62: #{tpu_custom_call.1} parent=59 // pred_check_branch
          %757 = sbr.rel (%p755) target = $region64
        $region63: #{tpu_custom_call.1} parent=59 // pred_region
          %s758 = sand.u32 %s121, 1
          %s759 = scalar_lea.sflag [#allocation4], %s758
          %s760 = sand.u32 %s121, 1
          %s761 = smul.addr %s760, 128
          %s762 = scalar_lea.vmem [#allocation9], %s761
          %763 = dma.done %s759, 2048
        $region64: #{tpu_custom_call.1} parent=59 // pred_fallthru
          _
      $region60: #{tpu_custom_call.1} parent=5 // pred_fallthru
        _
    $region6: #{tpu_custom_call.1} parent=1 // loop_footer
      %s22 = sadd.s32 1, %s18
    $region7: #{tpu_custom_call.1} parent=1 // loop_footer_branch
      %17 = sbr.rel target = $region3
    $region8: #{tpu_custom_call.1} parent=1 // loop_exit
      _
    %764 = vsyncpa [#allocation3], 1
    %s765 = scalar_lea.sflag [#allocation3], 1
    %766 = vsyncpa %s765, 1
    %767 = vsyncpa [#allocation8], 1
    %768 = vsyncpa [#allocation4], 1
    %s769 = scalar_lea.sflag [#allocation4], 1
    %770 = vsyncpa %s769, 1
    %771 = vsyncpa [#allocation5], 1
    %s772 = scalar_lea.sflag [#allocation5], 1
    %773 = vsyncpa %s772, 1

</llo_original>
